<compile_context>
chip_gen: v6e
topology: v6e:2x2x1
jax: 0.10.0
libtpu: 0.0.40
codegen_flags: <defaults>
</compile_context>

<pallas_src>
import jax
import jax.numpy as jnp
from jax import lax
from jax.experimental import pallas as pl
from jax.experimental.pallas import tpu as pltpu


def _make_kernel(num_layers: int, hidden: int, block_steps: int):
    """Kernel closure for static (num_layers, hidden, K steps/block)."""
    H = hidden
    L = num_layers
    K = block_steps

    def kernel(x_ref, h0_ref, c0_ref, *rest):
        # rest = (w_ih_0, w_hh_0, b_0, ..., w_ih_{L-1}, w_hh_{L-1}, b_{L-1},
        #         out_ref, h_sc, c_sc, hseq_sc, cseq_sc, gproj_sc)
        w_refs = rest[: 3 * L]
        out_ref = rest[3 * L]
        h_sc = rest[3 * L + 1]      # (L, B, H) carried hidden state
        c_sc = rest[3 * L + 2]      # (L, B, H) carried cell state
        hseq_sc = rest[3 * L + 3]   # (K, B, H) current layer's h sequence
        cseq_sc = rest[3 * L + 4]   # (K, B, H) current layer's c sequence
        gproj_sc = rest[3 * L + 5]  # (K, B, 4H) input projection

        s = pl.program_id(0)

        @pl.when(s == 0)
        def _init():
            h_sc[...] = h0_ref[...]
            c_sc[...] = c0_ref[...]

        B = x_ref.shape[1]

        # Hoisted once per K-step block: constant scale that folds the tanh
        # g-gate into a single full-width sigmoid pass (tanh(x)=2*sig(2x)-1).
        lane = lax.broadcasted_iota(jnp.int32, (1, 4 * H), 1)
        g_scale = jnp.where((lane >= 2 * H) & (lane < 3 * H),
                            jnp.float32(2.0), jnp.float32(1.0))

        for layer in range(L):
            w_ih_ref = w_refs[3 * layer]        # (in_dim, 4H)
            w_hh_ref = w_refs[3 * layer + 1]    # (H, 4H)
            b = w_refs[3 * layer + 2][...]      # (1, 4H)
            in_dim = w_ih_ref.shape[0]

            # --- non-recurrent projection: all K steps as ONE tall matmul ---
            if layer == 0:
                in_seq = x_ref[...].reshape(K * B, in_dim)
            else:
                # previous layer's h sequence (dropout p=0 / eval == identity)
                in_seq = hseq_sc[...].reshape(K * B, in_dim)
            gproj_sc[...] = (
                jnp.dot(in_seq, w_ih_ref[...],
                        preferred_element_type=jnp.float32) + b
            ).reshape(K, B, 4 * H)

            w_hh = w_hh_ref[...]                # load once, reused every step

            # --- serial recurrence: tiny recurrent matmul + VPU/EUP only ---
            def step(t, carry):
                h_prev, c_prev = carry          # carried in registers
                gates = gproj_sc[t] + jnp.dot(
                    h_prev, w_hh, preferred_element_type=jnp.float32)
                # one full-width (B, 4H) sigmoid pass for all four gates
                act = jax.nn.sigmoid(gates * g_scale)
                i_g = act[:, 0 * H:1 * H]
                f_g = act[:, 1 * H:2 * H]
                g_g = 2.0 * act[:, 2 * H:3 * H] - 1.0       # tanh(g pre-act)
                o_g = act[:, 3 * H:4 * H]
                c_new = f_g * c_prev + i_g * g_g
                h_new = o_g * (2.0 * jax.nn.sigmoid(2.0 * c_new) - 1.0)
                hseq_sc[t] = h_new              # off the recurrent chain
                cseq_sc[t] = c_new
                return (h_new, c_new)

            h_fin, c_fin = lax.fori_loop(
                0, K, step, (h_sc[layer], c_sc[layer]), unroll=(K <= 16))
            h_sc[layer] = h_fin
            c_sc[layer] = c_fin

            # Two block-level stores per layer into the lane-dense packed slab
            # [h_0 .. h_{L-1} | c_0 .. c_{L-1}] (output last dim = 2*L*H).
            out_ref[:, :, layer * H:(layer + 1) * H] = hseq_sc[...]
            out_ref[:, :, (L + layer) * H:(L + layer + 1) * H] = cseq_sc[...]

    return kernel


def _flatten_params(params):
    flat = []
    for (w_ih_t, w_hh_t, b) in params:
        flat += [w_ih_t, w_hh_t, b]
    return flat


def multi_layer_lstm_cells_seq(inputs, state, params, *, block_steps=8):
    """Run T stacked-LSTM-cell steps inside ONE pallas_call.

    Args:
      inputs: (T, B, I) f32 — one input per decode step.
      state:  (h, c), each (L, B, H) f32 — initial state.
      params: list of (w_ih^T, w_hh^T, b) per layer;
              w_ih^T: (in_dim, 4H), w_hh^T: (H, 4H), b: (1, 4H) = b_ih + b_hh.
    Returns:
      (hs, cs): each (T, L, B, H) — full state stack after every step,
      identical to calling the module forward T times carrying the state.
    """
    h0, c0 = state
    L, B, H = h0.shape
    T, _, I = inputs.shape

    # Pad batch to the sublane height (8); extra rows are computed & discarded.
    B_pad = ((B + 7) // 8) * 8
    if B_pad != B:
        inputs = jnp.pad(inputs, ((0, 0), (0, B_pad - B), (0, 0)))
        h0 = jnp.pad(h0, ((0, 0), (0, B_pad - B), (0, 0)))
        c0 = jnp.pad(c0, ((0, 0), (0, B_pad - B), (0, 0)))

    # Block K steps per grid iteration; pad T to a multiple of K (trailing
    # padded steps cannot corrupt earlier real outputs, results are sliced).
    K = min(block_steps, T)
    n_blocks = (T + K - 1) // K
    T_pad = n_blocks * K
    if T_pad != T:
        inputs = jnp.pad(inputs, ((0, T_pad - T), (0, 0), (0, 0)))

    flat = _flatten_params(params)
    out_w = 2 * L * H

    in_specs = [
        pl.BlockSpec((K, B_pad, I), lambda s: (s, 0, 0)),   # x chunk per block
        pl.BlockSpec((L, B_pad, H), lambda s: (0, 0, 0)),   # h0 (read at s==0)
        pl.BlockSpec((L, B_pad, H), lambda s: (0, 0, 0)),   # c0 (read at s==0)
    ]
    for (w_ih_t, w_hh_t, b) in params:
        # Constant index_map => weights DMA'd once, VMEM-resident for all blocks.
        in_specs.append(pl.BlockSpec(w_ih_t.shape, lambda s: (0, 0)))
        in_specs.append(pl.BlockSpec(w_hh_t.shape, lambda s: (0, 0)))
        in_specs.append(pl.BlockSpec(b.shape, lambda s: (0, 0)))

    out = pl.pallas_call(
        _make_kernel(L, H, K),
        out_shape=jax.ShapeDtypeStruct((T_pad, B_pad, out_w), jnp.float32),
        grid_spec=pltpu.PrefetchScalarGridSpec(
            num_scalar_prefetch=0,
            grid=(n_blocks,),
            in_specs=in_specs,
            out_specs=pl.BlockSpec((K, B_pad, out_w), lambda s: (s, 0, 0)),
            scratch_shapes=[
                pltpu.VMEM((L, B_pad, H), jnp.float32),      # carried h
                pltpu.VMEM((L, B_pad, H), jnp.float32),      # carried c
                pltpu.VMEM((K, B_pad, H), jnp.float32),      # layer h sequence
                pltpu.VMEM((K, B_pad, H), jnp.float32),      # layer c sequence
                pltpu.VMEM((K, B_pad, 4 * H), jnp.float32),  # input projection
            ],
        ),
        compiler_params=pltpu.CompilerParams(
            dimension_semantics=("arbitrary",)),   # true recurrence over blocks
    )(inputs, h0, c0, *flat)

    slab = out[:T, :B].reshape(T, B, 2, L, H)               # (T, B, 2, L, H)
    hs = jnp.transpose(slab[:, :, 0], (0, 2, 1, 3))         # (T, L, B, H)
    cs = jnp.transpose(slab[:, :, 1], (0, 2, 1, 3))
    return hs, cs


def multi_layer_lstm_cells(input_, state, params):
    """Single-step forward, matching MultiLayerLSTMCells.forward semantics."""
    hs, cs = multi_layer_lstm_cells_seq(input_[None], state, params,
                                        block_steps=1)
    return hs[0], cs[0]


# --------------------------- init / reference ----------------------------- #

def _xavier_normal(key, shape):
    fan_out, fan_in = shape
    std = (2.0 / (fan_in + fan_out)) ** 0.5
    return std * jax.random.normal(key, shape, dtype=jnp.float32)


def init_params(key, input_size, hidden_size, num_layers):
    """Mirrors reset_parameters(): xavier-normal per gate chunk of
    weight_ih / weight_hh; forget-gate bias chunk filled with 1 in both
    biases (so the combined bias forget chunk equals 2)."""
    params = []
    in_dim = input_size
    H = hidden_size
    for _ in range(num_layers):
        chunks_ih, chunks_hh = [], []
        for _g in range(4):
            key, k1, k2 = jax.random.split(key, 3)
            chunks_ih.append(_xavier_normal(k1, (H, in_dim)))
            chunks_hh.append(_xavier_normal(k2, (H, H)))
        w_ih = jnp.concatenate(chunks_ih, axis=0)   # (4H, in_dim)
        w_hh = jnp.concatenate(chunks_hh, axis=0)   # (4H, H)

        key, kb1, kb2 = jax.random.split(key, 3)
        bound = 1.0 / (H ** 0.5)
        b_ih = jax.random.uniform(kb1, (4 * H,), jnp.float32, -bound, bound)
        b_hh = jax.random.uniform(kb2, (4 * H,), jnp.float32, -bound, bound)
        b_ih = b_ih.at[H:2 * H].set(1.0)
        b_hh = b_hh.at[H:2 * H].set(1.0)

        params.append((w_ih.T, w_hh.T, (b_ih + b_hh).reshape(1, 4 * H)))
        in_dim = H
    return params


def reference_forward(input_, state, params):
    """Pure-JAX reference matching PyTorch nn.LSTMCell semantics."""
    h0, c0 = state
    L, B, H = h0.shape
    hs, cs = [], []
    inp = input_
    for layer in range(L):
        w_ih_t, w_hh_t, b = params[layer]
        gates = inp @ w_ih_t + h0[layer] @ w_hh_t + b
        i_g = jax.nn.sigmoid(gates[:, 0 * H:1 * H])
        f_g = jax.nn.sigmoid(gates[:, 1 * H:2 * H])
        g_g = jnp.tanh(gates[:, 2 * H:3 * H])
        o_g = jax.nn.sigmoid(gates[:, 3 * H:4 * H])
        c_new = f_g * c0[layer] + i_g * g_g
        h_new = o_g * jnp.tanh(c_new)
        hs.append(h_new)
        cs.append(c_new)
        inp = h_new
    return jnp.stack(hs, 0), jnp.stack(cs, 0)


if __name__ == "__main__":
    B = 2            # batch
    INPUT_SIZE = 48  # input feature size (differs from hidden on purpose)
    HIDDEN = 32      # hidden size -> gate axis 4H = 128 (lane-aligned)
    LAYERS = 2       # stacked LSTM cells
    T = 6            # decode steps for the amortized (sequence) variant

    key = jax.random.PRNGKey(0)
    key, kx, kh, kc, kp, ks = jax.random.split(key, 6)

    x = jax.random.normal(kx, (B, INPUT_SIZE), dtype=jnp.float32)
    h = jax.random.normal(kh, (LAYERS, B, HIDDEN), dtype=jnp.float32)
    c = jax.random.normal(kc, (LAYERS, B, HIDDEN), dtype=jnp.float32)
    params = init_params(kp, INPUT_SIZE, HIDDEN, LAYERS)

    # --- single step (== module forward) ---
    new_h, new_c = multi_layer_lstm_cells(x, (h, c), params)
    jax.block_until_ready((new_h, new_c))
    ref_h, ref_c = reference_forward(x, (h, c), params)
    assert new_h.shape == (LAYERS, B, HIDDEN) and new_c.shape == (LAYERS, B, HIDDEN)
    assert jnp.allclose(new_h, ref_h, atol=1e-4, rtol=1e-4)
    assert jnp.allclose(new_c, ref_c, atol=1e-4, rtol=1e-4)

    # --- T decode steps in one pallas_call (one grid block: K = T) ---
    xs = jax.random.normal(ks, (T, B, INPUT_SIZE), dtype=jnp.float32)
    hs, cs = multi_layer_lstm_cells_seq(xs, (h, c), params, block_steps=8)
    jax.block_until_ready((hs, cs))
    rh, rc = h, c
    for t in range(T):
        rh, rc = reference_forward(xs[t], (rh, rc), params)
        assert jnp.allclose(hs[t], rh, atol=1e-4, rtol=1e-4)
        assert jnp.allclose(cs[t], rc, atol=1e-4, rtol=1e-4)

    # --- multi-block path (K=4 -> 2 grid blocks, exercises state carry + T pad)
    hs2, cs2 = multi_layer_lstm_cells_seq(xs, (h, c), params, block_steps=4)
    jax.block_until_ready((hs2, cs2))
    assert jnp.allclose(hs2, hs, atol=1e-5, rtol=1e-5)
    assert jnp.allclose(cs2, cs, atol=1e-5, rtol=1e-5)

    print("KERNEL_OK")
</pallas_src>

<mosaic_0001>
module attributes {stable_mosaic.version = 11 : i64} {
  func.func @kernel(%arg0: i32, %arg1: memref<1x8x48xf32, #tpu.memory_space<vmem>>, %arg2: memref<2x8x32xf32, #tpu.memory_space<vmem>>, %arg3: memref<2x8x32xf32, #tpu.memory_space<vmem>>, %arg4: memref<48x128xf32, #tpu.memory_space<vmem>>, %arg5: memref<32x128xf32, #tpu.memory_space<vmem>>, %arg6: memref<1x128xf32, #tpu.memory_space<vmem>>, %arg7: memref<32x128xf32, #tpu.memory_space<vmem>>, %arg8: memref<32x128xf32, #tpu.memory_space<vmem>>, %arg9: memref<1x128xf32, #tpu.memory_space<vmem>>, %arg10: memref<1x8x128xf32, #tpu.memory_space<vmem>>, %arg11: memref<2x8x32xf32, #tpu.memory_space<vmem>>, %arg12: memref<2x8x32xf32, #tpu.memory_space<vmem>>, %arg13: memref<1x8x32xf32, #tpu.memory_space<vmem>>, %arg14: memref<1x8x32xf32, #tpu.memory_space<vmem>>, %arg15: memref<1x8x128xf32, #tpu.memory_space<vmem>>) attributes {dimension_semantics = [#tpu.dimension_semantics<arbitrary>], iteration_bounds = array<i64: 1>, scalar_prefetch = 0 : i64, scratch_operands = 5 : i64, tpu.core_type = #tpu.core_type<tc>, window_params = [{transform_indices = @transform_0, window_bounds = array<i64: 1, 8, 48>}, {pipeline_mode = #tpu.pipeline_mode<synchronous>, transform_indices = @transform_1, window_bounds = array<i64: 2, 8, 32>}, {pipeline_mode = #tpu.pipeline_mode<synchronous>, transform_indices = @transform_2, window_bounds = array<i64: 2, 8, 32>}, {pipeline_mode = #tpu.pipeline_mode<synchronous>, transform_indices = @transform_3, window_bounds = array<i64: 48, 128>}, {pipeline_mode = #tpu.pipeline_mode<synchronous>, transform_indices = @transform_4, window_bounds = array<i64: 32, 128>}, {pipeline_mode = #tpu.pipeline_mode<synchronous>, transform_indices = @transform_5, window_bounds = array<i64: 1, 128>}, {pipeline_mode = #tpu.pipeline_mode<synchronous>, transform_indices = @transform_6, window_bounds = array<i64: 32, 128>}, {pipeline_mode = #tpu.pipeline_mode<synchronous>, transform_indices = @transform_7, window_bounds = array<i64: 32, 128>}, {pipeline_mode = #tpu.pipeline_mode<synchronous>, transform_indices = @transform_8, window_bounds = array<i64: 1, 128>}, {transform_indices = @transform_9, window_bounds = array<i64: 1, 8, 128>}]} {
    %c0_i32 = arith.constant 0 : i32
    %0 = arith.cmpi eq, %arg0, %c0_i32 : i32
    %1 = arith.extui %0 : i1 to i32
    %c0_i32_0 = arith.constant 0 : i32
    %2 = arith.cmpi ne, %1, %c0_i32_0 : i32
    scf.if %2 {
      %c0_102 = arith.constant 0 : index
      %c0_103 = arith.constant 0 : index
      %c0_104 = arith.constant 0 : index
      %146 = vector.load %arg2[%c0_102, %c0_103, %c0_104] : memref<2x8x32xf32, #tpu.memory_space<vmem>>, vector<2x8x32xf32>
      %c0_105 = arith.constant 0 : index
      %c0_106 = arith.constant 0 : index
      %c0_107 = arith.constant 0 : index
      %147 = vector.load %arg11[%c0_105, %c0_106, %c0_107] : memref<2x8x32xf32, #tpu.memory_space<vmem>>, vector<2x8x32xf32>
      tpu.vector_store %arg11[%c0_105, %c0_106, %c0_107], %146 {strides = array<i32>} : memref<2x8x32xf32, #tpu.memory_space<vmem>>, vector<2x8x32xf32>,
      %c0_108 = arith.constant 0 : index
      %c0_109 = arith.constant 0 : index
      %c0_110 = arith.constant 0 : index
      %148 = vector.load %arg3[%c0_108, %c0_109, %c0_110] : memref<2x8x32xf32, #tpu.memory_space<vmem>>, vector<2x8x32xf32>
      %c0_111 = arith.constant 0 : index
      %c0_112 = arith.constant 0 : index
      %c0_113 = arith.constant 0 : index
      %149 = vector.load %arg12[%c0_111, %c0_112, %c0_113] : memref<2x8x32xf32, #tpu.memory_space<vmem>>, vector<2x8x32xf32>
      tpu.vector_store %arg12[%c0_111, %c0_112, %c0_113], %148 {strides = array<i32>} : memref<2x8x32xf32, #tpu.memory_space<vmem>>, vector<2x8x32xf32>,
    } else {
    }
    %3 = tpu.iota {dimensions = array<i32: 1>} : vector<1x128xi32>
    %c64_i32 = arith.constant 64 : i32
    %4 = vector.broadcast %c64_i32 : i32 to vector<1x128xi32>
    %5 = arith.cmpi sge, %3, %4 : vector<1x128xi32>
    %c96_i32 = arith.constant 96 : i32
    %6 = vector.broadcast %c96_i32 : i32 to vector<1x128xi32>
    %7 = arith.cmpi slt, %3, %6 : vector<1x128xi32>
    %8 = arith.andi %5, %7 : vector<1x128xi1>
    %cst = arith.constant 2.000000e+00 : f32
    %cst_1 = arith.constant 1.000000e+00 : f32
    %9 = vector.broadcast %cst : f32 to vector<1x128xf32>
    %10 = vector.broadcast %cst_1 : f32 to vector<1x128xf32>
    %11 = arith.select %8, %9, %10 : vector<1x128xi1>, vector<1x128xf32>
    %c0 = arith.constant 0 : index
    %c0_2 = arith.constant 0 : index
    %12 = vector.load %arg6[%c0, %c0_2] : memref<1x128xf32, #tpu.memory_space<vmem>>, vector<1x128xf32>
    %c0_3 = arith.constant 0 : index
    %c0_4 = arith.constant 0 : index
    %c0_5 = arith.constant 0 : index
    %13 = vector.load %arg1[%c0_3, %c0_4, %c0_5] : memref<1x8x48xf32, #tpu.memory_space<vmem>>, vector<1x8x48xf32>
    %14 = vector.shape_cast %13 : vector<1x8x48xf32> to vector<8x48xf32>
    %c0_6 = arith.constant 0 : index
    %c0_7 = arith.constant 0 : index
    %15 = vector.load %arg4[%c0_6, %c0_7] : memref<48x128xf32, #tpu.memory_space<vmem>>, vector<48x128xf32>
    %cst_8 = arith.constant dense<0.000000e+00> : vector<8x128xf32>
    %16 = tpu.matmul %14, %15, %cst_8 {dimension_numbers = #tpu.dot_dimension_numbers<[1], [0], [0], [1], [0, 0, 1, 1], [], []>} : vector<8x48xf32>, vector<48x128xf32>, vector<8x128xf32> -> vector<8x128xf32>
    %17 = vector.broadcast %12 : vector<1x128xf32> to vector<8x128xf32>
    %18 = arith.addf %16, %17 : vector<8x128xf32>
    %19 = vector.shape_cast %18 : vector<8x128xf32> to vector<1x8x128xf32>
    %c0_9 = arith.constant 0 : index
    %c0_10 = arith.constant 0 : index
    %c0_11 = arith.constant 0 : index
    %20 = vector.load %arg15[%c0_9, %c0_10, %c0_11] : memref<1x8x128xf32, #tpu.memory_space<vmem>>, vector<1x8x128xf32>
    tpu.vector_store %arg15[%c0_9, %c0_10, %c0_11], %19 {strides = array<i32>} : memref<1x8x128xf32, #tpu.memory_space<vmem>>, vector<1x8x128xf32>,
    %c0_12 = arith.constant 0 : index
    %c0_13 = arith.constant 0 : index
    %21 = vector.load %arg5[%c0_12, %c0_13] : memref<32x128xf32, #tpu.memory_space<vmem>>, vector<32x128xf32>
    %c0_14 = arith.constant 0 : index
    %c0_15 = arith.constant 0 : index
    %c0_16 = arith.constant 0 : index
    %22 = vector.load %arg11[%c0_14, %c0_15, %c0_16] : memref<2x8x32xf32, #tpu.memory_space<vmem>>, vector<1x8x32xf32>
    %23 = vector.shape_cast %22 : vector<1x8x32xf32> to vector<8x32xf32>
    %c0_17 = arith.constant 0 : index
    %c0_18 = arith.constant 0 : index
    %c0_19 = arith.constant 0 : index
    %24 = vector.load %arg12[%c0_17, %c0_18, %c0_19] : memref<2x8x32xf32, #tpu.memory_space<vmem>>, vector<1x8x32xf32>
    %25 = vector.shape_cast %24 : vector<1x8x32xf32> to vector<8x32xf32>
    %c0_i32_20 = arith.constant 0 : i32
    %26 = arith.index_cast %c0_i32_20 : i32 to index
    %c0_21 = arith.constant 0 : index
    %c0_22 = arith.constant 0 : index
    %27 = vector.load %arg15[%26, %c0_21, %c0_22] : memref<1x8x128xf32, #tpu.memory_space<vmem>>, vector<1x8x128xf32>
    %28 = vector.shape_cast %27 : vector<1x8x128xf32> to vector<8x128xf32>
    %cst_23 = arith.constant dense<0.000000e+00> : vector<8x128xf32>
    %29 = tpu.matmul %23, %21, %cst_23 {dimension_numbers = #tpu.dot_dimension_numbers<[1], [0], [0], [1], [0, 0, 1, 1], [], []>} : vector<8x32xf32>, vector<32x128xf32>, vector<8x128xf32> -> vector<8x128xf32>
    %30 = arith.addf %28, %29 : vector<8x128xf32>
    %31 = vector.broadcast %11 : vector<1x128xf32> to vector<8x128xf32>
    %32 = arith.mulf %30, %31 : vector<8x128xf32>
    %33 = arith.negf %32 : vector<8x128xf32>
    %34 = math.exp %33 : vector<8x128xf32>
    %cst_24 = arith.constant 1.000000e+00 : f32
    %35 = vector.broadcast %cst_24 : f32 to vector<8x128xf32>
    %36 = arith.addf %35, %34 : vector<8x128xf32>
    %37 = arith.divf %35, %36 : vector<8x128xf32>
    %38 = vector.extract_strided_slice %37 {offsets = [0, 0], sizes = [8, 32], strides = [1, 1]} : vector<8x128xf32> to vector<8x32xf32>
    %39 = vector.extract_strided_slice %37 {offsets = [0, 32], sizes = [8, 32], strides = [1, 1]} : vector<8x128xf32> to vector<8x32xf32>
    %40 = vector.extract_strided_slice %37 {offsets = [0, 64], sizes = [8, 32], strides = [1, 1]} : vector<8x128xf32> to vector<8x32xf32>
    %cst_25 = arith.constant 2.000000e+00 : f32
    %41 = vector.broadcast %cst_25 : f32 to vector<8x32xf32>
    %42 = arith.mulf %41, %40 : vector<8x32xf32>
    %cst_26 = arith.constant 1.000000e+00 : f32
    %43 = vector.broadcast %cst_26 : f32 to vector<8x32xf32>
    %44 = arith.subf %42, %43 : vector<8x32xf32>
    %45 = vector.extract_strided_slice %37 {offsets = [0, 96], sizes = [8, 32], strides = [1, 1]} : vector<8x128xf32> to vector<8x32xf32>
    %46 = arith.mulf %39, %25 : vector<8x32xf32>
    %47 = arith.mulf %38, %44 : vector<8x32xf32>
    %48 = arith.addf %46, %47 : vector<8x32xf32>
    %cst_27 = arith.constant 2.000000e+00 : f32
    %49 = vector.broadcast %cst_27 : f32 to vector<8x32xf32>
    %50 = arith.mulf %49, %48 : vector<8x32xf32>
    %51 = arith.negf %50 : vector<8x32xf32>
    %52 = math.exp %51 : vector<8x32xf32>
    %cst_28 = arith.constant 1.000000e+00 : f32
    %53 = vector.broadcast %cst_28 : f32 to vector<8x32xf32>
    %54 = arith.addf %53, %52 : vector<8x32xf32>
    %55 = arith.divf %53, %54 : vector<8x32xf32>
    %cst_29 = arith.constant 2.000000e+00 : f32
    %56 = vector.broadcast %cst_29 : f32 to vector<8x32xf32>
    %57 = arith.mulf %56, %55 : vector<8x32xf32>
    %cst_30 = arith.constant 1.000000e+00 : f32
    %58 = vector.broadcast %cst_30 : f32 to vector<8x32xf32>
    %59 = arith.subf %57, %58 : vector<8x32xf32>
    %60 = arith.mulf %45, %59 : vector<8x32xf32>
    %61 = arith.index_cast %c0_i32_20 : i32 to index
    %c0_31 = arith.constant 0 : index
    %c0_32 = arith.constant 0 : index
    %62 = vector.load %arg13[%61, %c0_31, %c0_32] : memref<1x8x32xf32, #tpu.memory_space<vmem>>, vector<1x8x32xf32>
    %63 = vector.shape_cast %62 : vector<1x8x32xf32> to vector<8x32xf32>
    %64 = vector.shape_cast %60 : vector<8x32xf32> to vector<1x8x32xf32>
    tpu.vector_store %arg13[%61, %c0_31, %c0_32], %64 {strides = array<i32>} : memref<1x8x32xf32, #tpu.memory_space<vmem>>, vector<1x8x32xf32>,
    %65 = arith.index_cast %c0_i32_20 : i32 to index
    %c0_33 = arith.constant 0 : index
    %c0_34 = arith.constant 0 : index
    %66 = vector.load %arg14[%65, %c0_33, %c0_34] : memref<1x8x32xf32, #tpu.memory_space<vmem>>, vector<1x8x32xf32>
    %67 = vector.shape_cast %66 : vector<1x8x32xf32> to vector<8x32xf32>
    %68 = vector.shape_cast %48 : vector<8x32xf32> to vector<1x8x32xf32>
    tpu.vector_store %arg14[%65, %c0_33, %c0_34], %68 {strides = array<i32>} : memref<1x8x32xf32, #tpu.memory_space<vmem>>, vector<1x8x32xf32>,
    %c1_i32 = arith.constant 1 : i32
    %c0_35 = arith.constant 0 : index
    %c0_36 = arith.constant 0 : index
    %c0_37 = arith.constant 0 : index
    %69 = vector.load %arg11[%c0_35, %c0_36, %c0_37] : memref<2x8x32xf32, #tpu.memory_space<vmem>>, vector<1x8x32xf32>
    %70 = vector.shape_cast %69 : vector<1x8x32xf32> to vector<8x32xf32>
    %71 = vector.shape_cast %60 : vector<8x32xf32> to vector<1x8x32xf32>
    tpu.vector_store %arg11[%c0_35, %c0_36, %c0_37], %71 {strides = array<i32>} : memref<2x8x32xf32, #tpu.memory_space<vmem>>, vector<1x8x32xf32>,
    %c0_38 = arith.constant 0 : index
    %c0_39 = arith.constant 0 : index
    %c0_40 = arith.constant 0 : index
    %72 = vector.load %arg12[%c0_38, %c0_39, %c0_40] : memref<2x8x32xf32, #tpu.memory_space<vmem>>, vector<1x8x32xf32>
    %73 = vector.shape_cast %72 : vector<1x8x32xf32> to vector<8x32xf32>
    %74 = vector.shape_cast %48 : vector<8x32xf32> to vector<1x8x32xf32>
    tpu.vector_store %arg12[%c0_38, %c0_39, %c0_40], %74 {strides = array<i32>} : memref<2x8x32xf32, #tpu.memory_space<vmem>>, vector<1x8x32xf32>,
    %c0_41 = arith.constant 0 : index
    %c0_42 = arith.constant 0 : index
    %c0_43 = arith.constant 0 : index
    %75 = vector.load %arg13[%c0_41, %c0_42, %c0_43] : memref<1x8x32xf32, #tpu.memory_space<vmem>>, vector<1x8x32xf32>
    %c0_44 = arith.constant 0 : index
    %c0_45 = arith.constant 0 : index
    %c0_46 = arith.constant 0 : index
    %76 = vector.load %arg10[%c0_44, %c0_45, %c0_46] : memref<1x8x128xf32, #tpu.memory_space<vmem>>, vector<1x8x32xf32>
    tpu.vector_store %arg10[%c0_44, %c0_45, %c0_46], %75 {strides = array<i32>} : memref<1x8x128xf32, #tpu.memory_space<vmem>>, vector<1x8x32xf32>,
    %c0_47 = arith.constant 0 : index
    %c0_48 = arith.constant 0 : index
    %c0_49 = arith.constant 0 : index
    %77 = vector.load %arg14[%c0_47, %c0_48, %c0_49] : memref<1x8x32xf32, #tpu.memory_space<vmem>>, vector<1x8x32xf32>
    %c0_50 = arith.constant 0 : index
    %c0_51 = arith.constant 0 : index
    %c64 = arith.constant 64 : index
    %78 = vector.load %arg10[%c0_50, %c0_51, %c64] : memref<1x8x128xf32, #tpu.memory_space<vmem>>, vector<1x8x32xf32>
    tpu.vector_store %arg10[%c0_50, %c0_51, %c64], %77 {strides = array<i32>} : memref<1x8x128xf32, #tpu.memory_space<vmem>>, vector<1x8x32xf32>,
    %c0_52 = arith.constant 0 : index
    %c0_53 = arith.constant 0 : index
    %79 = vector.load %arg9[%c0_52, %c0_53] : memref<1x128xf32, #tpu.memory_space<vmem>>, vector<1x128xf32>
    %c0_54 = arith.constant 0 : index
    %c0_55 = arith.constant 0 : index
    %c0_56 = arith.constant 0 : index
    %80 = vector.load %arg13[%c0_54, %c0_55, %c0_56] : memref<1x8x32xf32, #tpu.memory_space<vmem>>, vector<1x8x32xf32>
    %81 = vector.shape_cast %80 : vector<1x8x32xf32> to vector<8x32xf32>
    %c0_57 = arith.constant 0 : index
    %c0_58 = arith.constant 0 : index
    %82 = vector.load %arg7[%c0_57, %c0_58] : memref<32x128xf32, #tpu.memory_space<vmem>>, vector<32x128xf32>
    %cst_59 = arith.constant dense<0.000000e+00> : vector<8x128xf32>
    %83 = tpu.matmul %81, %82, %cst_59 {dimension_numbers = #tpu.dot_dimension_numbers<[1], [0], [0], [1], [0, 0, 1, 1], [], []>} : vector<8x32xf32>, vector<32x128xf32>, vector<8x128xf32> -> vector<8x128xf32>
    %84 = vector.broadcast %79 : vector<1x128xf32> to vector<8x128xf32>
    %85 = arith.addf %83, %84 : vector<8x128xf32>
    %86 = vector.shape_cast %85 : vector<8x128xf32> to vector<1x8x128xf32>
    %c0_60 = arith.constant 0 : index
    %c0_61 = arith.constant 0 : index
    %c0_62 = arith.constant 0 : index
    %87 = vector.load %arg15[%c0_60, %c0_61, %c0_62] : memref<1x8x128xf32, #tpu.memory_space<vmem>>, vector<1x8x128xf32>
    tpu.vector_store %arg15[%c0_60, %c0_61, %c0_62], %86 {strides = array<i32>} : memref<1x8x128xf32, #tpu.memory_space<vmem>>, vector<1x8x128xf32>,
    %c0_63 = arith.constant 0 : index
    %c0_64 = arith.constant 0 : index
    %88 = vector.load %arg8[%c0_63, %c0_64] : memref<32x128xf32, #tpu.memory_space<vmem>>, vector<32x128xf32>
    %c1 = arith.constant 1 : index
    %c0_65 = arith.constant 0 : index
    %c0_66 = arith.constant 0 : index
    %89 = vector.load %arg11[%c1, %c0_65, %c0_66] : memref<2x8x32xf32, #tpu.memory_space<vmem>>, vector<1x8x32xf32>
    %90 = vector.shape_cast %89 : vector<1x8x32xf32> to vector<8x32xf32>
    %c1_67 = arith.constant 1 : index
    %c0_68 = arith.constant 0 : index
    %c0_69 = arith.constant 0 : index
    %91 = vector.load %arg12[%c1_67, %c0_68, %c0_69] : memref<2x8x32xf32, #tpu.memory_space<vmem>>, vector<1x8x32xf32>
    %92 = vector.shape_cast %91 : vector<1x8x32xf32> to vector<8x32xf32>
    %c0_i32_70 = arith.constant 0 : i32
    %93 = arith.index_cast %c0_i32_70 : i32 to index
    %c0_71 = arith.constant 0 : index
    %c0_72 = arith.constant 0 : index
    %94 = vector.load %arg15[%93, %c0_71, %c0_72] : memref<1x8x128xf32, #tpu.memory_space<vmem>>, vector<1x8x128xf32>
    %95 = vector.shape_cast %94 : vector<1x8x128xf32> to vector<8x128xf32>
    %cst_73 = arith.constant dense<0.000000e+00> : vector<8x128xf32>
    %96 = tpu.matmul %90, %88, %cst_73 {dimension_numbers = #tpu.dot_dimension_numbers<[1], [0], [0], [1], [0, 0, 1, 1], [], []>} : vector<8x32xf32>, vector<32x128xf32>, vector<8x128xf32> -> vector<8x128xf32>
    %97 = arith.addf %95, %96 : vector<8x128xf32>
    %98 = vector.broadcast %11 : vector<1x128xf32> to vector<8x128xf32>
    %99 = arith.mulf %97, %98 : vector<8x128xf32>
    %100 = arith.negf %99 : vector<8x128xf32>
    %101 = math.exp %100 : vector<8x128xf32>
    %cst_74 = arith.constant 1.000000e+00 : f32
    %102 = vector.broadcast %cst_74 : f32 to vector<8x128xf32>
    %103 = arith.addf %102, %101 : vector<8x128xf32>
    %104 = arith.divf %102, %103 : vector<8x128xf32>
    %105 = vector.extract_strided_slice %104 {offsets = [0, 0], sizes = [8, 32], strides = [1, 1]} : vector<8x128xf32> to vector<8x32xf32>
    %106 = vector.extract_strided_slice %104 {offsets = [0, 32], sizes = [8, 32], strides = [1, 1]} : vector<8x128xf32> to vector<8x32xf32>
    %107 = vector.extract_strided_slice %104 {offsets = [0, 64], sizes = [8, 32], strides = [1, 1]} : vector<8x128xf32> to vector<8x32xf32>
    %cst_75 = arith.constant 2.000000e+00 : f32
    %108 = vector.broadcast %cst_75 : f32 to vector<8x32xf32>
    %109 = arith.mulf %108, %107 : vector<8x32xf32>
    %cst_76 = arith.constant 1.000000e+00 : f32
    %110 = vector.broadcast %cst_76 : f32 to vector<8x32xf32>
    %111 = arith.subf %109, %110 : vector<8x32xf32>
    %112 = vector.extract_strided_slice %104 {offsets = [0, 96], sizes = [8, 32], strides = [1, 1]} : vector<8x128xf32> to vector<8x32xf32>
    %113 = arith.mulf %106, %92 : vector<8x32xf32>
    %114 = arith.mulf %105, %111 : vector<8x32xf32>
    %115 = arith.addf %113, %114 : vector<8x32xf32>
    %cst_77 = arith.constant 2.000000e+00 : f32
    %116 = vector.broadcast %cst_77 : f32 to vector<8x32xf32>
    %117 = arith.mulf %116, %115 : vector<8x32xf32>
    %118 = arith.negf %117 : vector<8x32xf32>
    %119 = math.exp %118 : vector<8x32xf32>
    %cst_78 = arith.constant 1.000000e+00 : f32
    %120 = vector.broadcast %cst_78 : f32 to vector<8x32xf32>
    %121 = arith.addf %120, %119 : vector<8x32xf32>
    %122 = arith.divf %120, %121 : vector<8x32xf32>
    %cst_79 = arith.constant 2.000000e+00 : f32
    %123 = vector.broadcast %cst_79 : f32 to vector<8x32xf32>
    %124 = arith.mulf %123, %122 : vector<8x32xf32>
    %cst_80 = arith.constant 1.000000e+00 : f32
    %125 = vector.broadcast %cst_80 : f32 to vector<8x32xf32>
    %126 = arith.subf %124, %125 : vector<8x32xf32>
    %127 = arith.mulf %112, %126 : vector<8x32xf32>
    %128 = arith.index_cast %c0_i32_70 : i32 to index
    %c0_81 = arith.constant 0 : index
    %c0_82 = arith.constant 0 : index
    %129 = vector.load %arg13[%128, %c0_81, %c0_82] : memref<1x8x32xf32, #tpu.memory_space<vmem>>, vector<1x8x32xf32>
    %130 = vector.shape_cast %129 : vector<1x8x32xf32> to vector<8x32xf32>
    %131 = vector.shape_cast %127 : vector<8x32xf32> to vector<1x8x32xf32>
    tpu.vector_store %arg13[%128, %c0_81, %c0_82], %131 {strides = array<i32>} : memref<1x8x32xf32, #tpu.memory_space<vmem>>, vector<1x8x32xf32>,
    %132 = arith.index_cast %c0_i32_70 : i32 to index
    %c0_83 = arith.constant 0 : index
    %c0_84 = arith.constant 0 : index
    %133 = vector.load %arg14[%132, %c0_83, %c0_84] : memref<1x8x32xf32, #tpu.memory_space<vmem>>, vector<1x8x32xf32>
    %134 = vector.shape_cast %133 : vector<1x8x32xf32> to vector<8x32xf32>
    %135 = vector.shape_cast %115 : vector<8x32xf32> to vector<1x8x32xf32>
    tpu.vector_store %arg14[%132, %c0_83, %c0_84], %135 {strides = array<i32>} : memref<1x8x32xf32, #tpu.memory_space<vmem>>, vector<1x8x32xf32>,
    %c1_i32_85 = arith.constant 1 : i32
    %c1_86 = arith.constant 1 : index
    %c0_87 = arith.constant 0 : index
    %c0_88 = arith.constant 0 : index
    %136 = vector.load %arg11[%c1_86, %c0_87, %c0_88] : memref<2x8x32xf32, #tpu.memory_space<vmem>>, vector<1x8x32xf32>
    %137 = vector.shape_cast %136 : vector<1x8x32xf32> to vector<8x32xf32>
    %138 = vector.shape_cast %127 : vector<8x32xf32> to vector<1x8x32xf32>
    tpu.vector_store %arg11[%c1_86, %c0_87, %c0_88], %138 {strides = array<i32>} : memref<2x8x32xf32, #tpu.memory_space<vmem>>, vector<1x8x32xf32>,
    %c1_89 = arith.constant 1 : index
    %c0_90 = arith.constant 0 : index
    %c0_91 = arith.constant 0 : index
    %139 = vector.load %arg12[%c1_89, %c0_90, %c0_91] : memref<2x8x32xf32, #tpu.memory_space<vmem>>, vector<1x8x32xf32>
    %140 = vector.shape_cast %139 : vector<1x8x32xf32> to vector<8x32xf32>
    %141 = vector.shape_cast %115 : vector<8x32xf32> to vector<1x8x32xf32>
    tpu.vector_store %arg12[%c1_89, %c0_90, %c0_91], %141 {strides = array<i32>} : memref<2x8x32xf32, #tpu.memory_space<vmem>>, vector<1x8x32xf32>,
    %c0_92 = arith.constant 0 : index
    %c0_93 = arith.constant 0 : index
    %c0_94 = arith.constant 0 : index
    %142 = vector.load %arg13[%c0_92, %c0_93, %c0_94] : memref<1x8x32xf32, #tpu.memory_space<vmem>>, vector<1x8x32xf32>
    %c0_95 = arith.constant 0 : index
    %c0_96 = arith.constant 0 : index
    %c32 = arith.constant 32 : index
    %143 = vector.load %arg10[%c0_95, %c0_96, %c32] : memref<1x8x128xf32, #tpu.memory_space<vmem>>, vector<1x8x32xf32>
    tpu.vector_store %arg10[%c0_95, %c0_96, %c32], %142 {strides = array<i32>} : memref<1x8x128xf32, #tpu.memory_space<vmem>>, vector<1x8x32xf32>,
    %c0_97 = arith.constant 0 : index
    %c0_98 = arith.constant 0 : index
    %c0_99 = arith.constant 0 : index
    %144 = vector.load %arg14[%c0_97, %c0_98, %c0_99] : memref<1x8x32xf32, #tpu.memory_space<vmem>>, vector<1x8x32xf32>
    %c0_100 = arith.constant 0 : index
    %c0_101 = arith.constant 0 : index
    %c96 = arith.constant 96 : index
    %145 = vector.load %arg10[%c0_100, %c0_101, %c96] : memref<1x8x128xf32, #tpu.memory_space<vmem>>, vector<1x8x32xf32>
    tpu.vector_store %arg10[%c0_100, %c0_101, %c96], %144 {strides = array<i32>} : memref<1x8x128xf32, #tpu.memory_space<vmem>>, vector<1x8x32xf32>,
    return
  }
  func.func @transform_0(%arg0: i32) -> (i32, i32, i32) {
    %c0_i32 = arith.constant 0 : i32
    %c0_i32_0 = arith.constant 0 : i32
    %c0_i32_1 = arith.constant 0 : i32
    return %arg0, %c0_i32, %c0_i32_0 : i32, i32, i32
  }
  func.func @transform_1(%arg0: i32) -> (i32, i32, i32) {
    %c0_i32 = arith.constant 0 : i32
    %c0_i32_0 = arith.constant 0 : i32
    %c0_i32_1 = arith.constant 0 : i32
    %c0_i32_2 = arith.constant 0 : i32
    return %c0_i32, %c0_i32_0, %c0_i32_1 : i32, i32, i32
  }
  func.func @transform_2(%arg0: i32) -> (i32, i32, i32) {
    %c0_i32 = arith.constant 0 : i32
    %c0_i32_0 = arith.constant 0 : i32
    %c0_i32_1 = arith.constant 0 : i32
    %c0_i32_2 = arith.constant 0 : i32
    return %c0_i32, %c0_i32_0, %c0_i32_1 : i32, i32, i32
  }
  func.func @transform_3(%arg0: i32) -> (i32, i32) {
    %c0_i32 = arith.constant 0 : i32
    %c0_i32_0 = arith.constant 0 : i32
    %c0_i32_1 = arith.constant 0 : i32
    return %c0_i32, %c0_i32_0 : i32, i32
  }
  func.func @transform_4(%arg0: i32) -> (i32, i32) {
    %c0_i32 = arith.constant 0 : i32
    %c0_i32_0 = arith.constant 0 : i32
    %c0_i32_1 = arith.constant 0 : i32
    return %c0_i32, %c0_i32_0 : i32, i32
  }
  func.func @transform_5(%arg0: i32) -> (i32, i32) {
    %c0_i32 = arith.constant 0 : i32
    %c0_i32_0 = arith.constant 0 : i32
    %c0_i32_1 = arith.constant 0 : i32
    return %c0_i32, %c0_i32_0 : i32, i32
  }
  func.func @transform_6(%arg0: i32) -> (i32, i32) {
    %c0_i32 = arith.constant 0 : i32
    %c0_i32_0 = arith.constant 0 : i32
    %c0_i32_1 = arith.constant 0 : i32
    return %c0_i32, %c0_i32_0 : i32, i32
  }
  func.func @transform_7(%arg0: i32) -> (i32, i32) {
    %c0_i32 = arith.constant 0 : i32
    %c0_i32_0 = arith.constant 0 : i32
    %c0_i32_1 = arith.constant 0 : i32
    return %c0_i32, %c0_i32_0 : i32, i32
  }
  func.func @transform_8(%arg0: i32) -> (i32, i32) {
    %c0_i32 = arith.constant 0 : i32
    %c0_i32_0 = arith.constant 0 : i32
    %c0_i32_1 = arith.constant 0 : i32
    return %c0_i32, %c0_i32_0 : i32, i32
  }
  func.func @transform_9(%arg0: i32) -> (i32, i32, i32) {
    %c0_i32 = arith.constant 0 : i32
    %c0_i32_0 = arith.constant 0 : i32
    %c0_i32_1 = arith.constant 0 : i32
    return %arg0, %c0_i32, %c0_i32_0 : i32, i32, i32
  }
}

</mosaic_0001>

<llo_original>
// kernel: tpu_custom_call.1
$region0: #{tpu_custom_call.1}
  #allocation0 [shape = 'u32[]', space=smem, size = 0x4, offset = 0x4, fixed_abs, tag = 'smem constant byte address 0x4 - core index']
  #allocation1 [shape = 'u32[144,128]{1,0:T(1,128)}', space=vmem, size = 0x12000, scoped, tag = 'internal scratch']
  #allocation2 [shape = 'f32[2,8,32]{2,1,0:T(8,128)}', space=vmem, size = 0x2000, scoped, tag = 'scratch operand']
  #allocation3 [shape = 'f32[2,8,32]{2,1,0:T(8,128)}', space=vmem, size = 0x2000, scoped, tag = 'scratch operand']
  #allocation4 [shape = 'f32[1,8,32]{2,1,0:T(8,128)}', space=vmem, size = 0x1000, scoped, tag = 'scratch operand']
  #allocation5 [shape = 'f32[1,8,32]{2,1,0:T(8,128)}', space=vmem, size = 0x1000, scoped, tag = 'scratch operand']
  #allocation6 [shape = 'f32[1,8,128]{2,1,0:T(8,128)}', space=vmem, size = 0x1000, scoped, tag = 'scratch operand']
  %s0 = inlined_call_operand.hbm [shape: f32[1,8,48], index: 0, kind: input, shape index: {}]
  %s1 = inlined_call_operand.hbm [shape: f32[2,8,32], index: 1, kind: input, shape index: {}]
  %s2 = inlined_call_operand.hbm [shape: f32[2,8,32], index: 2, kind: input, shape index: {}]
  %s3 = inlined_call_operand.hbm [shape: f32[48,128], index: 3, kind: input, shape index: {}]
  %s4 = inlined_call_operand.hbm [shape: f32[32,128], index: 4, kind: input, shape index: {}]
  %s5 = inlined_call_operand.vmem [shape: f32[1,128], index: 5, kind: input, shape index: {}]
  %s6 = inlined_call_operand.hbm [shape: f32[32,128], index: 6, kind: input, shape index: {}]
  %s7 = inlined_call_operand.hbm [shape: f32[32,128], index: 7, kind: input, shape index: {}]
  %s8 = inlined_call_operand.vmem [shape: f32[1,128], index: 8, kind: input, shape index: {}]
  %s9 = inlined_call_operand.hbm [shape: f32[1,8,128], index: 9, kind: output, shape index: {}]
  %s10 = sld [smem:[#allocation0]]
  $region78: #{tpu_custom_call.1} parent=0
    _
  %s12 = ssub.s32 1, %s10
  %s13 = scalar_select 0, %s12, %s10
  $region1: #{tpu_custom_call.1} parent=0
    #allocation7 [shape = 'u8[4096]{0}', space=vmem, size = 0x1000, scoped, tag = 'input window, operand 0, single buffered']
    #allocation8 [shape = 's32[1]{0}', space=sflag, size = 0x4, scoped, tag = 'scoped memory for tpu_custom_call.1']
    #allocation9 [shape = 's32[1]{0}', space=sflag, size = 0x4, scoped, tag = 'scoped memory for tpu_custom_call.1']
    #allocation10 [shape = 'u8[8192]{0}', space=vmem, size = 0x2000, scoped, tag = 'input window, operand 1, single buffered']
    #allocation11 [shape = 's32[1]{0}', space=sflag, size = 0x4, scoped, tag = 'scoped memory for tpu_custom_call.1']
    #allocation12 [shape = 'u8[8192]{0}', space=vmem, size = 0x2000, scoped, tag = 'input window, operand 2, single buffered']
    #allocation13 [shape = 'u8[24576]{0}', space=vmem, size = 0x6000, scoped, tag = 'input window, operand 3, single buffered']
    #allocation14 [shape = 's32[1]{0}', space=sflag, size = 0x4, scoped, tag = 'scoped memory for tpu_custom_call.1']
    #allocation15 [shape = 'u8[16384]{0}', space=vmem, size = 0x4000, scoped, tag = 'input window, operand 4, single buffered']
    #allocation16 [shape = 'u8[16384]{0}', space=vmem, size = 0x4000, scoped, tag = 'input window, operand 6, single buffered']
    #allocation17 [shape = 's32[1]{0}', space=sflag, size = 0x4, scoped, tag = 'scoped memory for tpu_custom_call.1']
    #allocation18 [shape = 'u8[16384]{0}', space=vmem, size = 0x4000, scoped, tag = 'input window, operand 7, single buffered']
    #allocation19 [shape = 'u8[4096]{0}', space=vmem, size = 0x1000, scoped, tag = 'output window, operand 0, single buffered']
    %14 = vsyncpa [#allocation8], 0
    %15 = vsyncpa [#allocation11], 0
    %16 = vsyncpa [#allocation14], 0
    %17 = vsyncpa [#allocation17], 0
    %18 = vsyncpa [#allocation9], 0
    // Predicated region
    $region2: #{tpu_custom_call.1} parent=1 // pred_check
      _
    $region3: #{tpu_custom_call.1} parent=1 // pred_check_branch
      %20 = sbr.rel (0) target = $region5
    $region4: #{tpu_custom_call.1} parent=1 // pred_region
      %s22 = ssub.s32 128, 128
      %23 = vsyncadd [#allocation8], %s22
      %s25 = sshll.u32 [#allocation7], 4
      %s26 = int_to_ptr.vmem [resolvable:$true] %s25
      %28 = dma.hbm_to_vmem [thread:$0]  %s0, 128, %s26, [#allocation8]
    $region5: #{tpu_custom_call.1} parent=1 // pred_fallthru
      _
    // Predicated region
    $region6: #{tpu_custom_call.1} parent=1 // pred_check
      _
    $region7: #{tpu_custom_call.1} parent=1 // pred_check_branch
      %30 = sbr.rel (0) target = $region9
    $region8: #{tpu_custom_call.1} parent=1 // pred_region
      %s32 = ssub.s32 256, 256
      %33 = vsyncadd [#allocation11], %s32
      %s34 = sshll.u32 [#allocation10], 4
      %s35 = int_to_ptr.vmem [resolvable:$true] %s34
      %40 = dma.hbm_to_vmem [thread:$0]  %s1, 256, %s35, [#allocation11], 128, 128, 8
    $region9: #{tpu_custom_call.1} parent=1 // pred_fallthru
      _
    // Predicated region
    $region10: #{tpu_custom_call.1} parent=1 // pred_check
      _
    $region11: #{tpu_custom_call.1} parent=1 // pred_check_branch
      %42 = sbr.rel (0) target = $region13
    $region12: #{tpu_custom_call.1} parent=1 // pred_region
      %s44 = ssub.s32 256, 256
      %45 = vsyncadd [#allocation11], %s44
      %s46 = sshll.u32 [#allocation12], 4
      %s47 = int_to_ptr.vmem [resolvable:$true] %s46
      %52 = dma.hbm_to_vmem [thread:$0]  %s2, 256, %s47, [#allocation11], 128, 128, 8
    $region13: #{tpu_custom_call.1} parent=1 // pred_fallthru
      _
    // Predicated region
    $region14: #{tpu_custom_call.1} parent=1 // pred_check
      _
    $region15: #{tpu_custom_call.1} parent=1 // pred_check_branch
      %54 = sbr.rel (0) target = $region17
    $region16: #{tpu_custom_call.1} parent=1 // pred_region
      %s56 = ssub.s32 768, 768
      %57 = vsyncadd [#allocation14], %s56
      %s58 = sshll.u32 [#allocation13], 4
      %s59 = int_to_ptr.vmem [resolvable:$true] %s58
      %64 = dma.hbm_to_vmem [thread:$0]  %s3, 768, %s59, [#allocation14], 128, 128, 8
    $region17: #{tpu_custom_call.1} parent=1 // pred_fallthru
      _
    // Predicated region
    $region18: #{tpu_custom_call.1} parent=1 // pred_check
      _
    $region19: #{tpu_custom_call.1} parent=1 // pred_check_branch
      %66 = sbr.rel (0) target = $region21
    $region20: #{tpu_custom_call.1} parent=1 // pred_region
      %s68 = ssub.s32 512, 512
      %69 = vsyncadd [#allocation14], %s68
      %s70 = sshll.u32 [#allocation15], 4
      %s71 = int_to_ptr.vmem [resolvable:$true] %s70
      %76 = dma.hbm_to_vmem [thread:$0]  %s4, 512, %s71, [#allocation14], 128, 128, 8
    $region21: #{tpu_custom_call.1} parent=1 // pred_fallthru
      _
    // Predicated region
    $region22: #{tpu_custom_call.1} parent=1 // pred_check
      _
    $region23: #{tpu_custom_call.1} parent=1 // pred_check_branch
      %78 = sbr.rel (0) target = $region25
    $region24: #{tpu_custom_call.1} parent=1 // pred_region
      _
    $region25: #{tpu_custom_call.1} parent=1 // pred_fallthru
      _
    // Predicated region
    $region26: #{tpu_custom_call.1} parent=1 // pred_check
      _
    $region27: #{tpu_custom_call.1} parent=1 // pred_check_branch
      %80 = sbr.rel (0) target = $region29
    $region28: #{tpu_custom_call.1} parent=1 // pred_region
      %s82 = ssub.s32 512, 512
      %83 = vsyncadd [#allocation17], %s82
      %s84 = sshll.u32 [#allocation16], 4
      %s85 = int_to_ptr.vmem [resolvable:$true] %s84
      %90 = dma.hbm_to_vmem [thread:$0]  %s6, 512, %s85, [#allocation17], 128, 128, 8
    $region29: #{tpu_custom_call.1} parent=1 // pred_fallthru
      _
    // Predicated region
    $region30: #{tpu_custom_call.1} parent=1 // pred_check
      _
    $region31: #{tpu_custom_call.1} parent=1 // pred_check_branch
      %92 = sbr.rel (0) target = $region33
    $region32: #{tpu_custom_call.1} parent=1 // pred_region
      %s94 = ssub.s32 512, 512
      %95 = vsyncadd [#allocation17], %s94
      %s96 = sshll.u32 [#allocation18], 4
      %s97 = int_to_ptr.vmem [resolvable:$true] %s96
      %102 = dma.hbm_to_vmem [thread:$0]  %s7, 512, %s97, [#allocation17], 128, 128, 8
    $region33: #{tpu_custom_call.1} parent=1 // pred_fallthru
      _
    // Predicated region
    $region34: #{tpu_custom_call.1} parent=1 // pred_check
      _
    $region35: #{tpu_custom_call.1} parent=1 // pred_check_branch
      %104 = sbr.rel (0) target = $region37
    $region36: #{tpu_custom_call.1} parent=1 // pred_region
      _
    $region37: #{tpu_custom_call.1} parent=1 // pred_fallthru
      _
    // Predicated region
    $region38: #{tpu_custom_call.1} parent=1 // pred_check
      _
    $region39: #{tpu_custom_call.1} parent=1 // pred_check_branch
      %106 = sbr.rel (0) target = $region41
    $region40: #{tpu_custom_call.1} parent=1 // pred_region
      %107 = dma.done [#allocation8], 128
    $region41: #{tpu_custom_call.1} parent=1 // pred_fallthru
      _
    // Predicated region
    $region42: #{tpu_custom_call.1} parent=1 // pred_check
      _
    $region43: #{tpu_custom_call.1} parent=1 // pred_check_branch
      %109 = sbr.rel (0) target = $region45
    $region44: #{tpu_custom_call.1} parent=1 // pred_region
      %110 = dma.done [#allocation11], 256
    $region45: #{tpu_custom_call.1} parent=1 // pred_fallthru
      _
    // Predicated region
    $region46: #{tpu_custom_call.1} parent=1 // pred_check
      _
    $region47: #{tpu_custom_call.1} parent=1 // pred_check_branch
      %112 = sbr.rel (0) target = $region49
    $region48: #{tpu_custom_call.1} parent=1 // pred_region
      %113 = dma.done [#allocation11], 256
    $region49: #{tpu_custom_call.1} parent=1 // pred_fallthru
      _
    // Predicated region
    $region50: #{tpu_custom_call.1} parent=1 // pred_check
      _
    $region51: #{tpu_custom_call.1} parent=1 // pred_check_branch
      %115 = sbr.rel (0) target = $region53
    $region52: #{tpu_custom_call.1} parent=1 // pred_region
      %116 = dma.done [#allocation14], 768
    $region53: #{tpu_custom_call.1} parent=1 // pred_fallthru
      _
    // Predicated region
    $region54: #{tpu_custom_call.1} parent=1 // pred_check
      _
    $region55: #{tpu_custom_call.1} parent=1 // pred_check_branch
      %118 = sbr.rel (0) target = $region57
    $region56: #{tpu_custom_call.1} parent=1 // pred_region
      %119 = dma.done [#allocation14], 512
    $region57: #{tpu_custom_call.1} parent=1 // pred_fallthru
      _
    // Predicated region
    $region58: #{tpu_custom_call.1} parent=1 // pred_check
      _
    $region59: #{tpu_custom_call.1} parent=1 // pred_check_branch
      %121 = sbr.rel (0) target = $region61
    $region60: #{tpu_custom_call.1} parent=1 // pred_region
      %122 = dma.done [#allocation17], 512
    $region61: #{tpu_custom_call.1} parent=1 // pred_fallthru
      _
    // Predicated region
    $region62: #{tpu_custom_call.1} parent=1 // pred_check
      _
    $region63: #{tpu_custom_call.1} parent=1 // pred_check_branch
      %124 = sbr.rel (0) target = $region65
    $region64: #{tpu_custom_call.1} parent=1 // pred_region
      %125 = dma.done [#allocation17], 512
    $region65: #{tpu_custom_call.1} parent=1 // pred_fallthru
      _
    %p126 = scmp.eq.s32.totalorder 0, 0
    // Predicated region
    $region66: #{tpu_custom_call.1} parent=1 // pred_check
      %p127 = pneg %p126
    $region67: #{tpu_custom_call.1} parent=1 // pred_check_branch
      %129 = sbr.rel (%p127) target = $region69
    $region68: #{tpu_custom_call.1} parent=1 // pred_region
      %v130 = vld [vmem:[#allocation10] sm:$0xff]
      %v131 = vld [vmem:[#allocation10 + $0x8] sm:$0xff]
      %vm132 = vcmask 261120
      %133 = vst.msk [vmem:[#allocation2] sm:$0xff] %vm132, %v130
      %134 = vst.msk [vmem:[#allocation2 + $0x8] sm:$0xff] %vm132, %v131
      %v135 = vld [vmem:[#allocation12] sm:$0xff]
      %v136 = vld [vmem:[#allocation12 + $0x8] sm:$0xff]
      %137 = vst.msk [vmem:[#allocation3] sm:$0xff] %vm132, %v135
      %138 = vst.msk [vmem:[#allocation3 + $0x8] sm:$0xff] %vm132, %v136
    $region69: #{tpu_custom_call.1} parent=1 // pred_fallthru
      _
    %v139 = vlaneseq
    %v140 = vand.u32 %v139, 127
    %vm141 = vcmp.ge.s32.totalorder %v140, 64
    %vm142 = vcmp.lt.s32.totalorder %v140, 96
    %vm143 = vmand %vm141, %vm142
    %v144 = vsel %vm143, 2.0, 1.0
    %v145 = vld [vmem:[%s5] sm:$0x1]
    %v146 = vld [vmem:[#allocation7] sm:$0xff]
    %v147 = vld [vmem:[#allocation13] sm:$0xff]
    %v148 = vld [vmem:[#allocation13 + $0x8] sm:$0xff]
    %v149 = vld [vmem:[#allocation13 + $0x10] sm:$0xff]
    %v150 = vld [vmem:[#allocation13 + $0x18] sm:$0xff]
    %v151 = vld [vmem:[#allocation13 + $0x20] sm:$0xff]
    %v152 = vld [vmem:[#allocation13 + $0x28] sm:$0xff]
    %v154 = vlaneseq
    %v155 = vshrl.u32 %v154, 7
    %v156 = vsub.s32 0, %v155
    %v157 = vrot.slane %v145, %v156
    %vm159 = vcmask 392192
    %v161 = vsel %vm159, %v146, 0
    %163 = vmatprep.subr.mxu0 0.0
    %164 = vmatpush1.msra.mxu0 0.0
    %165 = vmatprep.subr.mxu0 0.0
    %166 = vmatpush1.msra.mxu0 0.0
    %167 = vmatprep.subr.mxu0 0.0
    %168 = vmatpush1.msra.mxu0 0.0
    %169 = vmatprep.subr.mxu0 0.0
    %170 = vmatpush1.msra.mxu0 0.0
    %171 = vmatprep.subr.mxu0 0.0
    %172 = vmatpush1.msra.mxu0 0.0
    %173 = vmatprep.subr.mxu0 0.0
    %174 = vmatpush1.msra.mxu0 0.0
    %175 = vmatprep.subr.mxu0 0.0
    %176 = vmatpush1.msra.mxu0 0.0
    %177 = vmatprep.subr.mxu0 0.0
    %178 = vmatpush1.msra.mxu0 0.0
    %179 = vmatprep.subr.mxu0 0.0
    %180 = vmatpush1.msra.mxu0 0.0
    %181 = vmatprep.subr.mxu0 0.0
    %182 = vmatpush1.msra.mxu0 0.0
    %183 = vmatprep.subr.mxu0 0.0
    %184 = vmatpush1.msra.mxu0 %v152
    %185 = vmatprep.subr.mxu0 0.0
    %186 = vmatpush1.msra.mxu0 %v151
    %187 = vmatprep.subr.mxu0 0.0
    %188 = vmatpush1.msra.mxu0 %v150
    %189 = vmatprep.subr.mxu0 0.0
    %190 = vmatpush1.msra.mxu0 %v149
    %191 = vmatprep.subr.mxu0 0.0
    %192 = vmatpush1.msra.mxu0 %v148
    %193 = vmatprep.subr.mxu0 0.0
    %194 = vmatpush1.msra.mxu0 %v147
    %195 = vmatprep.subr.mxu0 0.0
    %196 = vmatpush2.msra.mxu0 0.0
    %197 = vmatprep.subr.mxu0 0.0
    %198 = vmatpush2.msra.mxu0 0.0
    %199 = vmatprep.subr.mxu0 0.0
    %200 = vmatpush2.msra.mxu0 0.0
    %201 = vmatprep.subr.mxu0 0.0
    %202 = vmatpush2.msra.mxu0 0.0
    %203 = vmatprep.subr.mxu0 0.0
    %204 = vmatpush2.msra.mxu0 0.0
    %205 = vmatprep.subr.mxu0 0.0
    %206 = vmatpush2.msra.mxu0 0.0
    %207 = vmatprep.subr.mxu0 0.0
    %208 = vmatpush2.msra.mxu0 0.0
    %209 = vmatprep.subr.mxu0 0.0
    %210 = vmatpush2.msra.mxu0 0.0
    %211 = vmatprep.subr.mxu0 0.0
    %212 = vmatpush2.msra.mxu0 0.0
    %213 = vmatprep.subr.mxu0 0.0
    %214 = vmatpush2.msra.mxu0 0.0
    %215 = vmatprep.subr.mxu0 0.0
    %216 = vmatpush2.msra.mxu0 0.0
    %217 = vmatprep.subr.mxu0 0.0
    %218 = vmatpush2.msra.mxu0 0.0
    %219 = vmatprep.subr.mxu0 0.0
    %220 = vmatpush2.msra.mxu0 0.0
    %221 = vmatprep.subr.mxu0 0.0
    %222 = vmatpush2.msra.mxu0 0.0
    %223 = vmatprep.subr.mxu0 0.0
    %224 = vmatpush2.msra.mxu0 0.0
    %225 = vmatprep.subr.mxu0 0.0
    %226 = vmatpush2.msra.mxu0 0.0
    %227 = vmatprep.mubr.f32.mxu0 0.0
    %228 = vmatmul.mubr.f32.gmra.mxu0 %v161
    %v229 = vpop.f32.mrf.mxu0
    %v230 = vadd.f32 %v157, %v229
    %v231 = vpop.f32.mrf.mxu0
    %232 = vdwg.mxu0
    %233 = vst [vmem:[#allocation6] sm:$0xff] %v230
    %v234 = vld [vmem:[#allocation15] sm:$0xff]
    %v235 = vld [vmem:[#allocation15 + $0x8] sm:$0xff]
    %v236 = vld [vmem:[#allocation15 + $0x10] sm:$0xff]
    %v237 = vld [vmem:[#allocation15 + $0x18] sm:$0xff]
    %v238 = vld [vmem:[#allocation2] sm:$0xff]
    %v239 = vld [vmem:[#allocation3] sm:$0xff]
    %v240 = vld [vmem:[#allocation6] sm:$0xff]
    %vm241 = vcmask 261120
    %v243 = vsel %vm241, %v238, 0
    %245 = vmatprep.subr.mxu0 0.0
    %246 = vmatpush1.msra.mxu0 0.0
    %247 = vmatprep.subr.mxu0 0.0
    %248 = vmatpush1.msra.mxu0 0.0
    %249 = vmatprep.subr.mxu0 0.0
    %250 = vmatpush1.msra.mxu0 0.0
    %251 = vmatprep.subr.mxu0 0.0
    %252 = vmatpush1.msra.mxu0 0.0
    %253 = vmatprep.subr.mxu0 0.0
    %254 = vmatpush1.msra.mxu0 0.0
    %255 = vmatprep.subr.mxu0 0.0
    %256 = vmatpush1.msra.mxu0 0.0
    %257 = vmatprep.subr.mxu0 0.0
    %258 = vmatpush1.msra.mxu0 0.0
    %259 = vmatprep.subr.mxu0 0.0
    %260 = vmatpush1.msra.mxu0 0.0
    %261 = vmatprep.subr.mxu0 0.0
    %262 = vmatpush1.msra.mxu0 0.0
    %263 = vmatprep.subr.mxu0 0.0
    %264 = vmatpush1.msra.mxu0 0.0
    %265 = vmatprep.subr.mxu0 0.0
    %266 = vmatpush1.msra.mxu0 0.0
    %267 = vmatprep.subr.mxu0 0.0
    %268 = vmatpush1.msra.mxu0 0.0
    %269 = vmatprep.subr.mxu0 0.0
    %270 = vmatpush1.msra.mxu0 %v237
    %271 = vmatprep.subr.mxu0 0.0
    %272 = vmatpush1.msra.mxu0 %v236
    %273 = vmatprep.subr.mxu0 0.0
    %274 = vmatpush1.msra.mxu0 %v235
    %275 = vmatprep.subr.mxu0 0.0
    %276 = vmatpush1.msra.mxu0 %v234
    %277 = vmatprep.subr.mxu0 0.0
    %278 = vmatpush2.msra.mxu0 0.0
    %279 = vmatprep.subr.mxu0 0.0
    %280 = vmatpush2.msra.mxu0 0.0
    %281 = vmatprep.subr.mxu0 0.0
    %282 = vmatpush2.msra.mxu0 0.0
    %283 = vmatprep.subr.mxu0 0.0
    %284 = vmatpush2.msra.mxu0 0.0
    %285 = vmatprep.subr.mxu0 0.0
    %286 = vmatpush2.msra.mxu0 0.0
    %287 = vmatprep.subr.mxu0 0.0
    %288 = vmatpush2.msra.mxu0 0.0
    %289 = vmatprep.subr.mxu0 0.0
    %290 = vmatpush2.msra.mxu0 0.0
    %291 = vmatprep.subr.mxu0 0.0
    %292 = vmatpush2.msra.mxu0 0.0
    %293 = vmatprep.subr.mxu0 0.0
    %294 = vmatpush2.msra.mxu0 0.0
    %295 = vmatprep.subr.mxu0 0.0
    %296 = vmatpush2.msra.mxu0 0.0
    %297 = vmatprep.subr.mxu0 0.0
    %298 = vmatpush2.msra.mxu0 0.0
    %299 = vmatprep.subr.mxu0 0.0
    %300 = vmatpush2.msra.mxu0 0.0
    %301 = vmatprep.subr.mxu0 0.0
    %302 = vmatpush2.msra.mxu0 0.0
    %303 = vmatprep.subr.mxu0 0.0
    %304 = vmatpush2.msra.mxu0 0.0
    %305 = vmatprep.subr.mxu0 0.0
    %306 = vmatpush2.msra.mxu0 0.0
    %307 = vmatprep.subr.mxu0 0.0
    %308 = vmatpush2.msra.mxu0 0.0
    %309 = vmatprep.mubr.f32.mxu0 0.0
    %310 = vmatmul.mubr.f32.gmra.mxu0 %v243
    %v311 = vpop.f32.mrf.mxu0
    %v312 = vadd.f32 0.0, %v311
    %v313 = vpop.f32.mrf.mxu0
    %314 = vdwg.mxu0
    %v315 = vadd.f32 %v240, %v312
    %v316 = vmul.f32 %v315, %v144
    %v317 = vxor.u32 %v316, 2147483648
    %v318 = vmul.f32 %v317, 1.442695
    %v319 = vpow.pop %v318
    %v320 = vadd.f32 %v319, 1.0
    %v321 = vrcp.pop %v320
    %v322 = vmul.f32 1.0, %v321
    %v323 = vmul.f32 %v322, 2.0
    %v324 = vsub.f32 %v323, 1.0
    %326 = vrot.lane.b32.xlu0 %v239, 32
    %v327 = vpop.permute.xlu0 %326
    %v329 = vmul.f32 %v322, %v327
    %331 = vrot.lane.b32.xlu0 %v324, 64
    %v332 = vpop.permute.xlu0 %331
    %v334 = vmul.f32 %v322, %v332
    %336 = vrot.lane.b32.xlu0 %v334, 32
    %v337 = vpop.permute.xlu0 %336
    %v339 = vadd.f32 %v329, %v337
    %v340 = vmul.f32 %v339, 2.0
    %v341 = vxor.u32 %v340, 2147483648
    %v342 = vmul.f32 %v341, 1.442695
    %v343 = vpow.pop %v342
    %v344 = vadd.f32 %v343, 1.0
    %v345 = vrcp.pop %v344
    %v346 = vmul.f32 1.0, %v345
    %v347 = vmul.f32 %v346, 2.0
    %v348 = vsub.f32 %v347, 1.0
    %350 = vrot.lane.b32.xlu0 %v348, 64
    %v351 = vpop.permute.xlu0 %350
    %v353 = vmul.f32 %v322, %v351
    %355 = vrot.lane.b32.xlu0 %v353, 32
    %v356 = vpop.permute.xlu0 %355
    %358 = vst.msk [vmem:[#allocation4] sm:$0xff] %vm241, %v356
    %360 = vrot.lane.b32.xlu0 %v339, 96
    %v361 = vpop.permute.xlu0 %360
    %363 = vst.msk [vmem:[#allocation5] sm:$0xff] %vm241, %v361
    %364 = vst.msk [vmem:[#allocation2] sm:$0xff] %vm241, %v356
    %365 = vst.msk [vmem:[#allocation3] sm:$0xff] %vm241, %v361
    %v366 = vld [vmem:[#allocation4] sm:$0xff]
    %367 = vst.msk [vmem:[#allocation19] sm:$0xff] %vm241, %v366
    %v368 = vld [vmem:[#allocation5] sm:$0xff]
    %370 = vrot.lane.b32.xlu0 %v368, 64
    %v371 = vpop.permute.xlu0 %370
    %vm373 = vcmask 785920
    %374 = vst.msk [vmem:[#allocation19] sm:$0xff] %vm373, %v371
    %v375 = vld [vmem:[%s8] sm:$0x1]
    %v376 = vld [vmem:[#allocation4] sm:$0xff]
    %v377 = vld [vmem:[#allocation16] sm:$0xff]
    %v378 = vld [vmem:[#allocation16 + $0x8] sm:$0xff]
    %v379 = vld [vmem:[#allocation16 + $0x10] sm:$0xff]
    %v380 = vld [vmem:[#allocation16 + $0x18] sm:$0xff]
    %v382 = vlaneseq
    %v383 = vshrl.u32 %v382, 7
    %v384 = vsub.s32 0, %v383
    %v385 = vrot.slane %v375, %v384
    %v388 = vsel %vm241, %v376, 0
    %390 = vmatprep.subr.mxu0 0.0
    %391 = vmatpush1.msra.mxu0 0.0
    %392 = vmatprep.subr.mxu0 0.0
    %393 = vmatpush1.msra.mxu0 0.0
    %394 = vmatprep.subr.mxu0 0.0
    %395 = vmatpush1.msra.mxu0 0.0
    %396 = vmatprep.subr.mxu0 0.0
    %397 = vmatpush1.msra.mxu0 0.0
    %398 = vmatprep.subr.mxu0 0.0
    %399 = vmatpush1.msra.mxu0 0.0
    %400 = vmatprep.subr.mxu0 0.0
    %401 = vmatpush1.msra.mxu0 0.0
    %402 = vmatprep.subr.mxu0 0.0
    %403 = vmatpush1.msra.mxu0 0.0
    %404 = vmatprep.subr.mxu0 0.0
    %405 = vmatpush1.msra.mxu0 0.0
    %406 = vmatprep.subr.mxu0 0.0
    %407 = vmatpush1.msra.mxu0 0.0
    %408 = vmatprep.subr.mxu0 0.0
    %409 = vmatpush1.msra.mxu0 0.0
    %410 = vmatprep.subr.mxu0 0.0
    %411 = vmatpush1.msra.mxu0 0.0
    %412 = vmatprep.subr.mxu0 0.0
    %413 = vmatpush1.msra.mxu0 0.0
    %414 = vmatprep.subr.mxu0 0.0
    %415 = vmatpush1.msra.mxu0 %v380
    %416 = vmatprep.subr.mxu0 0.0
    %417 = vmatpush1.msra.mxu0 %v379
    %418 = vmatprep.subr.mxu0 0.0
    %419 = vmatpush1.msra.mxu0 %v378
    %420 = vmatprep.subr.mxu0 0.0
    %421 = vmatpush1.msra.mxu0 %v377
    %422 = vmatprep.subr.mxu0 0.0
    %423 = vmatpush2.msra.mxu0 0.0
    %424 = vmatprep.subr.mxu0 0.0
    %425 = vmatpush2.msra.mxu0 0.0
    %426 = vmatprep.subr.mxu0 0.0
    %427 = vmatpush2.msra.mxu0 0.0
    %428 = vmatprep.subr.mxu0 0.0
    %429 = vmatpush2.msra.mxu0 0.0
    %430 = vmatprep.subr.mxu0 0.0
    %431 = vmatpush2.msra.mxu0 0.0
    %432 = vmatprep.subr.mxu0 0.0
    %433 = vmatpush2.msra.mxu0 0.0
    %434 = vmatprep.subr.mxu0 0.0
    %435 = vmatpush2.msra.mxu0 0.0
    %436 = vmatprep.subr.mxu0 0.0
    %437 = vmatpush2.msra.mxu0 0.0
    %438 = vmatprep.subr.mxu0 0.0
    %439 = vmatpush2.msra.mxu0 0.0
    %440 = vmatprep.subr.mxu0 0.0
    %441 = vmatpush2.msra.mxu0 0.0
    %442 = vmatprep.subr.mxu0 0.0
    %443 = vmatpush2.msra.mxu0 0.0
    %444 = vmatprep.subr.mxu0 0.0
    %445 = vmatpush2.msra.mxu0 0.0
    %446 = vmatprep.subr.mxu0 0.0
    %447 = vmatpush2.msra.mxu0 0.0
    %448 = vmatprep.subr.mxu0 0.0
    %449 = vmatpush2.msra.mxu0 0.0
    %450 = vmatprep.subr.mxu0 0.0
    %451 = vmatpush2.msra.mxu0 0.0
    %452 = vmatprep.subr.mxu0 0.0
    %453 = vmatpush2.msra.mxu0 0.0
    %454 = vmatprep.mubr.f32.mxu0 0.0
    %455 = vmatmul.mubr.f32.gmra.mxu0 %v388
    %v456 = vpop.f32.mrf.mxu0
    %v457 = vadd.f32 %v385, %v456
    %v458 = vpop.f32.mrf.mxu0
    %459 = vdwg.mxu0
    %460 = vst [vmem:[#allocation6] sm:$0xff] %v457
    %v461 = vld [vmem:[#allocation18] sm:$0xff]
    %v462 = vld [vmem:[#allocation18 + $0x8] sm:$0xff]
    %v463 = vld [vmem:[#allocation18 + $0x10] sm:$0xff]
    %v464 = vld [vmem:[#allocation18 + $0x18] sm:$0xff]
    %s465 = scalar_lea.vmem [#allocation2], 8
    %v466 = vld [vmem:[%s465] sm:$0xff]
    %s467 = scalar_lea.vmem [#allocation3], 8
    %v468 = vld [vmem:[%s467] sm:$0xff]
    %v469 = vld [vmem:[#allocation6] sm:$0xff]
    %v471 = vsel %vm241, %v466, 0
    %473 = vmatprep.subr.mxu0 0.0
    %474 = vmatpush1.msra.mxu0 0.0
    %475 = vmatprep.subr.mxu0 0.0
    %476 = vmatpush1.msra.mxu0 0.0
    %477 = vmatprep.subr.mxu0 0.0
    %478 = vmatpush1.msra.mxu0 0.0
    %479 = vmatprep.subr.mxu0 0.0
    %480 = vmatpush1.msra.mxu0 0.0
    %481 = vmatprep.subr.mxu0 0.0
    %482 = vmatpush1.msra.mxu0 0.0
    %483 = vmatprep.subr.mxu0 0.0
    %484 = vmatpush1.msra.mxu0 0.0
    %485 = vmatprep.subr.mxu0 0.0
    %486 = vmatpush1.msra.mxu0 0.0
    %487 = vmatprep.subr.mxu0 0.0
    %488 = vmatpush1.msra.mxu0 0.0
    %489 = vmatprep.subr.mxu0 0.0
    %490 = vmatpush1.msra.mxu0 0.0
    %491 = vmatprep.subr.mxu0 0.0
    %492 = vmatpush1.msra.mxu0 0.0
    %493 = vmatprep.subr.mxu0 0.0
    %494 = vmatpush1.msra.mxu0 0.0
    %495 = vmatprep.subr.mxu0 0.0
    %496 = vmatpush1.msra.mxu0 0.0
    %497 = vmatprep.subr.mxu0 0.0
    %498 = vmatpush1.msra.mxu0 %v464
    %499 = vmatprep.subr.mxu0 0.0
    %500 = vmatpush1.msra.mxu0 %v463
    %501 = vmatprep.subr.mxu0 0.0
    %502 = vmatpush1.msra.mxu0 %v462
    %503 = vmatprep.subr.mxu0 0.0
    %504 = vmatpush1.msra.mxu0 %v461
    %505 = vmatprep.subr.mxu0 0.0
    %506 = vmatpush2.msra.mxu0 0.0
    %507 = vmatprep.subr.mxu0 0.0
    %508 = vmatpush2.msra.mxu0 0.0
    %509 = vmatprep.subr.mxu0 0.0
    %510 = vmatpush2.msra.mxu0 0.0
    %511 = vmatprep.subr.mxu0 0.0
    %512 = vmatpush2.msra.mxu0 0.0
    %513 = vmatprep.subr.mxu0 0.0
    %514 = vmatpush2.msra.mxu0 0.0
    %515 = vmatprep.subr.mxu0 0.0
    %516 = vmatpush2.msra.mxu0 0.0
    %517 = vmatprep.subr.mxu0 0.0
    %518 = vmatpush2.msra.mxu0 0.0
    %519 = vmatprep.subr.mxu0 0.0
    %520 = vmatpush2.msra.mxu0 0.0
    %521 = vmatprep.subr.mxu0 0.0
    %522 = vmatpush2.msra.mxu0 0.0
    %523 = vmatprep.subr.mxu0 0.0
    %524 = vmatpush2.msra.mxu0 0.0
    %525 = vmatprep.subr.mxu0 0.0
    %526 = vmatpush2.msra.mxu0 0.0
    %527 = vmatprep.subr.mxu0 0.0
    %528 = vmatpush2.msra.mxu0 0.0
    %529 = vmatprep.subr.mxu0 0.0
    %530 = vmatpush2.msra.mxu0 0.0
    %531 = vmatprep.subr.mxu0 0.0
    %532 = vmatpush2.msra.mxu0 0.0
    %533 = vmatprep.subr.mxu0 0.0
    %534 = vmatpush2.msra.mxu0 0.0
    %535 = vmatprep.subr.mxu0 0.0
    %536 = vmatpush2.msra.mxu0 0.0
    %537 = vmatprep.mubr.f32.mxu0 0.0
    %538 = vmatmul.mubr.f32.gmra.mxu0 %v471
    %v539 = vpop.f32.mrf.mxu0
    %v540 = vadd.f32 0.0, %v539
    %v541 = vpop.f32.mrf.mxu0
    %542 = vdwg.mxu0
    %v543 = vadd.f32 %v469, %v540
    %v544 = vmul.f32 %v543, %v144
    %v545 = vxor.u32 %v544, 2147483648
    %v546 = vmul.f32 %v545, 1.442695
    %v547 = vpow.pop %v546
    %v548 = vadd.f32 %v547, 1.0
    %v549 = vrcp.pop %v548
    %v550 = vmul.f32 1.0, %v549
    %v551 = vmul.f32 %v550, 2.0
    %v552 = vsub.f32 %v551, 1.0
    %554 = vrot.lane.b32.xlu0 %v468, 32
    %v555 = vpop.permute.xlu0 %554
    %v557 = vmul.f32 %v550, %v555
    %559 = vrot.lane.b32.xlu0 %v552, 64
    %v560 = vpop.permute.xlu0 %559
    %v562 = vmul.f32 %v550, %v560
    %564 = vrot.lane.b32.xlu0 %v562, 32
    %v565 = vpop.permute.xlu0 %564
    %v567 = vadd.f32 %v557, %v565
    %v568 = vmul.f32 %v567, 2.0
    %v569 = vxor.u32 %v568, 2147483648
    %v570 = vmul.f32 %v569, 1.442695
    %v571 = vpow.pop %v570
    %v572 = vadd.f32 %v571, 1.0
    %v573 = vrcp.pop %v572
    %v574 = vmul.f32 1.0, %v573
    %v575 = vmul.f32 %v574, 2.0
    %v576 = vsub.f32 %v575, 1.0
    %578 = vrot.lane.b32.xlu0 %v576, 64
    %v579 = vpop.permute.xlu0 %578
    %v581 = vmul.f32 %v550, %v579
    %583 = vrot.lane.b32.xlu0 %v581, 32
    %v584 = vpop.permute.xlu0 %583
    %586 = vst.msk [vmem:[#allocation4] sm:$0xff] %vm241, %v584
    %588 = vrot.lane.b32.xlu0 %v567, 96
    %v589 = vpop.permute.xlu0 %588
    %591 = vst.msk [vmem:[#allocation5] sm:$0xff] %vm241, %v589
    %592 = vst.msk [vmem:[%s465] sm:$0xff] %vm241, %v584
    %593 = vst.msk [vmem:[%s467] sm:$0xff] %vm241, %v589
    %v594 = vld [vmem:[#allocation4] sm:$0xff]
    %596 = vrot.lane.b32.xlu0 %v594, 32
    %v597 = vpop.permute.xlu0 %596
    %vm599 = vcmask 523520
    %600 = vst.msk [vmem:[#allocation19] sm:$0xff] %vm599, %v597
    %v601 = vld [vmem:[#allocation5] sm:$0xff]
    %603 = vrot.lane.b32.xlu0 %v601, 96
    %v604 = vpop.permute.xlu0 %603
    %vm606 = vcmask 1048320
    %607 = vst.msk [vmem:[#allocation19] sm:$0xff] %vm606, %v604
    // Predicated region
    $region70: #{tpu_custom_call.1} parent=1 // pred_check
      _
    $region71: #{tpu_custom_call.1} parent=1 // pred_check_branch
      %609 = sbr.rel (0) target = $region73
    $region72: #{tpu_custom_call.1} parent=1 // pred_region
      %s611 = ssub.s32 128, 128
      %612 = vsyncadd [#allocation9], %s611
      %s614 = sshll.u32 [#allocation19], 4
      %s615 = int_to_ptr.vmem [resolvable:$true] %s614
      %617 = dma.vmem_to_hbm [thread:$0]  %s615, 128, %s9, [#allocation9]
    $region73: #{tpu_custom_call.1} parent=1 // pred_fallthru
      _
    // Predicated region
    $region74: #{tpu_custom_call.1} parent=1 // pred_check
      _
    $region75: #{tpu_custom_call.1} parent=1 // pred_check_branch
      %619 = sbr.rel (0) target = $region77
    $region76: #{tpu_custom_call.1} parent=1 // pred_region
      %620 = dma.done [#allocation9], 128
    $region77: #{tpu_custom_call.1} parent=1 // pred_fallthru
      _
    %621 = vsyncpa [#allocation8], 1
    %622 = vsyncpa [#allocation11], 1
    %623 = vsyncpa [#allocation14], 1
    %624 = vsyncpa [#allocation17], 1
    %625 = vsyncpa [#allocation9], 1

</llo_original>
